<compile_context>
chip_gen: v7x
topology: tpu7x:2x2x1
jax: 0.10.0
libtpu: 0.0.40
codegen_flags: <defaults>
</compile_context>

<pallas_src>
import jax
import jax.numpy as jnp
from jax import lax
from jax.experimental import pallas as pl
from jax.experimental.pallas import tpu as pltpu


def _round_up(x, m):
    return ((x + m - 1) // m) * m


# ---------------------------------------------------------------------------
# Path A (small vocab): VMEM-resident table + one-hot MXU matmul per token tile
# ---------------------------------------------------------------------------
def _make_onehot_kernel(n_rows):
    def kernel(ids_ref, tbl_ref, out_ref):
        # ids_ref: (T, 1) int32 ; tbl_ref: (N_pad, D) ; out_ref: (T, D)
        t = out_ref.shape[0]
        n_pad = tbl_ref.shape[0]
        ids = jnp.clip(ids_ref[...], 0, n_rows - 1)                  # (T, 1)
        col = lax.broadcasted_iota(jnp.int32, (t, n_pad), 1)         # (T, N_pad)
        onehot = (col == ids).astype(tbl_ref.dtype)                  # (T, N_pad)
        out_ref[...] = jnp.dot(
            onehot, tbl_ref[...], preferred_element_type=jnp.float32
        ).astype(out_ref.dtype)

    return kernel


def _gather_onehot(flat_ids, emb_table, out_dtype):
    n_tok = flat_ids.shape[0]
    n_rows, d = emb_table.shape

    t = min(256, _round_up(n_tok, 8))          # token tile (multiple of 8)
    n_tok_pad = _round_up(n_tok, t)
    n_pad = max(128, _round_up(n_rows, 128))   # MXU-friendly contraction dim

    ids = jnp.pad(flat_ids.astype(jnp.int32), (0, n_tok_pad - n_tok))
    ids2d = ids.reshape(n_tok_pad, 1)
    tbl = jnp.pad(emb_table, ((0, n_pad - n_rows), (0, 0)))

    out = pl.pallas_call(
        _make_onehot_kernel(n_rows),
        out_shape=jax.ShapeDtypeStruct((n_tok_pad, d), out_dtype),
        grid_spec=pltpu.PrefetchScalarGridSpec(
            num_scalar_prefetch=0,
            grid=(n_tok_pad // t,),
            in_specs=[
                pl.BlockSpec((t, 1), lambda i: (i, 0)),
                # Constant block index -> table fetched once, stays VMEM-resident.
                pl.BlockSpec((n_pad, d), lambda i: (0, 0)),
            ],
            out_specs=pl.BlockSpec((t, d), lambda i: (i, 0)),
        ),
        compiler_params=pltpu.CompilerParams(
            dimension_semantics=("parallel",)),
    )(ids2d, tbl)
    return out[:n_tok]


# ---------------------------------------------------------------------------
# Path B (large vocab): batched manual row-DMA gather from an HBM-resident table
# ---------------------------------------------------------------------------
def _make_dma_gather_kernel(t, n_rows, k):
    def kernel(ids_ref, tbl_hbm, out_ref, row_buf, sems):
        # ids_ref : (n_tok_pad,) int32 in SMEM (scalar prefetch)
        # tbl_hbm : (N, D) in HBM (memory_space=ANY)
        # out_ref : (T, D) VMEM output tile ; row_buf : (T, D) VMEM scratch
        base = pl.program_id(0) * t

        @pl.loop(0, t)
        def _issue(j):
            slot = lax.rem(j, k)

            # Before reusing this semaphore slot, retire the copy issued k steps ago.
            @pl.when(j >= k)
            def _():
                pltpu.make_async_copy(
                    tbl_hbm.at[pl.ds(0, 1), :],
                    row_buf.at[pl.ds(j - k, 1), :],
                    sems.at[slot],
                ).wait()

            tok = jnp.clip(ids_ref[base + j], 0, n_rows - 1)
            pltpu.make_async_copy(
                tbl_hbm.at[pl.ds(tok, 1), :],
                row_buf.at[pl.ds(j, 1), :],
                sems.at[slot],
            ).start()

        # Drain the last k in-flight copies (t % k == 0 so DMA t-k+s used slot s).
        @pl.loop(0, k)
        def _drain(s):
            pltpu.make_async_copy(
                tbl_hbm.at[pl.ds(0, 1), :],
                row_buf.at[pl.ds(t - k + s, 1), :],
                sems.at[s],
            ).wait()

        out_ref[...] = row_buf[...].astype(out_ref.dtype)

    return kernel


def _gather_dma(flat_ids, emb_table, out_dtype, *, k=8):
    n_tok = flat_ids.shape[0]
    n_rows, d = emb_table.shape

    t = min(256, _round_up(n_tok, 8))          # token tile; multiple of 8 and of k
    n_tok_pad = _round_up(n_tok, t)
    assert t % k == 0

    ids = jnp.pad(flat_ids.astype(jnp.int32), (0, n_tok_pad - n_tok))

    out = pl.pallas_call(
        _make_dma_gather_kernel(t, n_rows, k),
        out_shape=jax.ShapeDtypeStruct((n_tok_pad, d), out_dtype),
        grid_spec=pltpu.PrefetchScalarGridSpec(
            num_scalar_prefetch=1,                       # flat ids -> SMEM
            grid=(n_tok_pad // t,),
            in_specs=[pl.BlockSpec(memory_space=pl.ANY)],  # table stays in HBM
            out_specs=pl.BlockSpec((t, d), lambda i, ids: (i, 0)),
            scratch_shapes=[
                pltpu.VMEM((t, d), emb_table.dtype),
                pltpu.SemaphoreType.DMA((k,)),
            ],
        ),
        compiler_params=pltpu.CompilerParams(
            dimension_semantics=("arbitrary",)),
    )(ids, emb_table)
    return out[:n_tok]


# ---------------------------------------------------------------------------
# EmbeddingModel.forward equivalent
# ---------------------------------------------------------------------------
def embedding_forward(token_seqs, emb_table, covec_table=None, get_covecs=False,
                      out_dtype=None, vmem_table_budget=4 * 1024 * 1024):
    """Pallas equivalent of EmbeddingModel.forward(token_seqs, get_covecs)."""
    B, S = token_seqs.shape
    n_rows, d = emb_table.shape
    out_dtype = emb_table.dtype if out_dtype is None else out_dtype
    flat_ids = token_seqs.reshape(-1).astype(jnp.int32)

    def gather(table):
        n_pad = max(128, _round_up(table.shape[0], 128))
        tbl_bytes = n_pad * d * jnp.dtype(table.dtype).itemsize
        if tbl_bytes <= vmem_table_budget:
            out = _gather_onehot(flat_ids, table, out_dtype)
        else:
            out = _gather_dma(flat_ids, table, out_dtype)
        return out.reshape(B, S, d)

    embs = gather(emb_table)
    if get_covecs:
        # TODO(synk): upstream __init__ has a bug (overwrites embeddings.weight
        # instead of covec_embeddings.weight); here we gather from the covec table.
        return embs, gather(covec_table)
    return embs, None


def build_embedding_table(key, vocab, dim, zero_padding=False):
    """Deterministic synthetic stand-in for h_embs: [matrix | unk | padding]."""
    k_mat, k_unk, k_pad = jax.random.split(key, 3)
    matrix = jax.random.normal(k_mat, (vocab, dim), dtype=jnp.float32)
    unk = jax.random.normal(k_unk, (1, dim), dtype=jnp.float32)
    if zero_padding:
        padding = jnp.zeros((1, dim), dtype=jnp.float32)
    else:
        # np.random.normal(-0.15, 0.15, dim)
        padding = -0.15 + 0.15 * jax.random.normal(k_pad, (1, dim), dtype=jnp.float32)
    return jnp.concatenate([matrix, unk, padding], axis=0)


if __name__ == "__main__":
    key = jax.random.PRNGKey(0)
    k_emb, k_ids = jax.random.split(key)

    vocab, dim = 30, 128           # n_embs = vocab + 2 (unk + padding)
    batch, seq = 2, 8

    emb_table = build_embedding_table(k_emb, vocab, dim)
    n_embs = emb_table.shape[0]
    unk_id, padding_id = vocab, vocab + 1

    # token ids may hit regular vocab, unk_id, or padding_id
    token_seqs = jax.random.randint(k_ids, (batch, seq), 0, n_embs, dtype=jnp.int32)
    ref = jnp.take(emb_table, token_seqs, axis=0)

    # default path: small table -> VMEM-resident one-hot MXU gather
    embs, covecs = embedding_forward(token_seqs, emb_table)
    embs = jax.block_until_ready(embs)
    assert embs.shape == (batch, seq, dim)
    assert covecs is None
    assert jnp.allclose(embs, ref), "one-hot gather mismatch vs reference"

    # large-vocab path (forced): batched manual row-DMA gather from HBM
    embs_dma, _ = embedding_forward(token_seqs, emb_table, vmem_table_budget=0)
    embs_dma = jax.block_until_ready(embs_dma)
    assert jnp.allclose(embs_dma, ref), "DMA gather mismatch vs reference"

    # get_padding_vec() equivalent
    pad_vec, _ = embedding_forward(jnp.array([[padding_id]], dtype=jnp.int32), emb_table)
    pad_vec = jax.block_until_ready(pad_vec).reshape(dim)
    assert jnp.allclose(pad_vec, emb_table[padding_id])

    # TODO(synk): store_covecs=True construction path not modeled (upstream also
    # overwrites self.embeddings.weight instead of covec_embeddings.weight).

    print("KERNEL_OK")
</pallas_src>

<mosaic_0001>
module attributes {stable_mosaic.version = 11 : i64} {
  func.func @kernel(%arg0: i32, %arg1: memref<16x1xi32, #tpu.memory_space<vmem>>, %arg2: memref<128x128xf32, #tpu.memory_space<vmem>>, %arg3: memref<16x128xf32, #tpu.memory_space<vmem>>) attributes {dimension_semantics = [#tpu.dimension_semantics<parallel>], iteration_bounds = array<i64: 1>, scalar_prefetch = 0 : i64, scratch_operands = 0 : i64, tpu.core_type = #tpu.core_type<tc>, window_params = [{transform_indices = @transform_0, window_bounds = array<i64: 16, 1>}, {pipeline_mode = #tpu.pipeline_mode<synchronous>, transform_indices = @transform_1, window_bounds = array<i64: 128, 128>}, {transform_indices = @transform_2, window_bounds = array<i64: 16, 128>}]} {
    %c0 = arith.constant 0 : index
    %c0_0 = arith.constant 0 : index
    %0 = vector.load %arg1[%c0, %c0_0] : memref<16x1xi32, #tpu.memory_space<vmem>>, vector<16x1xi32>
    %c0_i32 = arith.constant 0 : i32
    %c31_i32 = arith.constant 31 : i32
    %1 = vector.broadcast %c0_i32 : i32 to vector<16x1xi32>
    %2 = arith.maxsi %1, %0 : vector<16x1xi32>
    %3 = vector.broadcast %c31_i32 : i32 to vector<16x1xi32>
    %4 = arith.minsi %3, %2 : vector<16x1xi32>
    %5 = tpu.iota {dimensions = array<i32: 1>} : vector<16x128xi32>
    %6 = vector.broadcast %4 : vector<16x1xi32> to vector<16x128xi32>
    %7 = arith.cmpi eq, %5, %6 : vector<16x128xi32>
    %8 = arith.extui %7 : vector<16x128xi1> to vector<16x128xi32>
    %9 = arith.sitofp %8 : vector<16x128xi32> to vector<16x128xf32>
    %c0_1 = arith.constant 0 : index
    %c0_2 = arith.constant 0 : index
    %10 = vector.load %arg2[%c0_1, %c0_2] : memref<128x128xf32, #tpu.memory_space<vmem>>, vector<128x128xf32>
    %cst = arith.constant dense<0.000000e+00> : vector<16x128xf32>
    %11 = tpu.matmul %9, %10, %cst {dimension_numbers = #tpu.dot_dimension_numbers<[1], [0], [0], [1], [0, 0, 1, 1], [], []>} : vector<16x128xf32>, vector<128x128xf32>, vector<16x128xf32> -> vector<16x128xf32>
    %c0_3 = arith.constant 0 : index
    %c0_4 = arith.constant 0 : index
    %12 = vector.load %arg3[%c0_3, %c0_4] : memref<16x128xf32, #tpu.memory_space<vmem>>, vector<16x128xf32>
    tpu.vector_store %arg3[%c0_3, %c0_4], %11 {strides = array<i32>} : memref<16x128xf32, #tpu.memory_space<vmem>>, vector<16x128xf32>,
    return
  }
  func.func @transform_0(%arg0: i32) -> (i32, i32) {
    %c0_i32 = arith.constant 0 : i32
    %c0_i32_0 = arith.constant 0 : i32
    return %arg0, %c0_i32 : i32, i32
  }
  func.func @transform_1(%arg0: i32) -> (i32, i32) {
    %c0_i32 = arith.constant 0 : i32
    %c0_i32_0 = arith.constant 0 : i32
    %c0_i32_1 = arith.constant 0 : i32
    return %c0_i32, %c0_i32_0 : i32, i32
  }
  func.func @transform_2(%arg0: i32) -> (i32, i32) {
    %c0_i32 = arith.constant 0 : i32
    %c0_i32_0 = arith.constant 0 : i32
    return %arg0, %c0_i32 : i32, i32
  }
}

</mosaic_0001>

<llo_original>
// kernel: tpu_custom_call.1
$region0: #{tpu_custom_call.1}
  #allocation0 [shape = 'u32[]', space=smem, size = 0x4, offset = 0x4, fixed_abs, tag = 'smem constant byte address 0x4 - core index']
  #allocation1 [shape = 'u32[144,128]{1,0:T(1,128)}', space=vmem, size = 0x12000, scoped, tag = 'internal scratch']
  %s0 = inlined_call_operand.vmem [shape: s32[16,1], index: 0, kind: input, shape index: {}]
  %s1 = inlined_call_operand.hbm [shape: f32[128,128], index: 1, kind: input, shape index: {}]
  %s2 = inlined_call_operand.hbm [shape: f32[16,128], index: 2, kind: output, shape index: {}]
  %s3 = sld [smem:[#allocation0]]
  $region22: #{tpu_custom_call.1} parent=0
    _
  %s5 = ssub.s32 1, %s3
  %s6 = scalar_select 0, %s5, %s3
  $region1: #{tpu_custom_call.1} parent=0
    #allocation2 [shape = 'u8[65536]{0}', space=vmem, size = 0x10000, scoped, tag = 'input window, operand 1, single buffered']
    #allocation3 [shape = 's32[1]{0}', space=sflag, size = 0x4, scoped, tag = 'scoped memory for tpu_custom_call.1']
    #allocation4 [shape = 's32[1]{0}', space=sflag, size = 0x4, scoped, tag = 'scoped memory for tpu_custom_call.1']
    #allocation5 [shape = 'u8[8192]{0}', space=vmem, size = 0x2000, scoped, tag = 'output window, operand 0, single buffered']
    %7 = vsyncpa [#allocation3], 0
    %8 = vsyncpa [#allocation4], 0
    // Predicated region
    $region2: #{tpu_custom_call.1} parent=1 // pred_check
      _
    $region3: #{tpu_custom_call.1} parent=1 // pred_check_branch
      %10 = sbr.rel (0) target = $region5
    $region4: #{tpu_custom_call.1} parent=1 // pred_region
      _
    $region5: #{tpu_custom_call.1} parent=1 // pred_fallthru
      _
    // Predicated region
    $region6: #{tpu_custom_call.1} parent=1 // pred_check
      _
    $region7: #{tpu_custom_call.1} parent=1 // pred_check_branch
      %12 = sbr.rel (0) target = $region9
    $region8: #{tpu_custom_call.1} parent=1 // pred_region
      %s14 = ssub.s32 2048, 2048
      %15 = vsyncadd [#allocation3], %s14
      %s16 = sshll.u32 [#allocation2], 4
      %s17 = int_to_ptr.vmem [resolvable:$true] %s16
      %22 = dma.hbm_to_vmem [thread:$0]  %s1, 2048, %s17, [#allocation3], 128, 128, 8
    $region9: #{tpu_custom_call.1} parent=1 // pred_fallthru
      _
    // Predicated region
    $region10: #{tpu_custom_call.1} parent=1 // pred_check
      _
    $region11: #{tpu_custom_call.1} parent=1 // pred_check_branch
      %24 = sbr.rel (0) target = $region13
    $region12: #{tpu_custom_call.1} parent=1 // pred_region
      %25 = dma.done [#allocation3], 2048
    $region13: #{tpu_custom_call.1} parent=1 // pred_fallthru
      _
    %v26 = vld [vmem:[%s0] sm:$0xff]
    %v27 = vld [vmem:[%s0 + $0x8] sm:$0xff]
    %vm28 = vcmp.gt.s32.totalorder %v26, 0
    %v29 = vsel %vm28, %v26, 0
    %vm30 = vcmp.gt.s32.totalorder %v27, 0
    %v31 = vsel %vm30, %v27, 0
    %vm32 = vcmp.lt.s32.totalorder %v29, 31
    %v33 = vsel %vm32, %v29, 31
    %vm34 = vcmp.lt.s32.totalorder %v31, 31
    %v35 = vsel %vm34, %v31, 31
    %v36 = vlaneseq
    %v37 = vand.u32 %v36, 127
    %38 = vset.pattern.permute.xlu0 0
    %39 = vperm.xlu0 %38, %v33
    %v40 = vpop.permute.xlu0 %39
    %41 = vset.pattern.permute.xlu0 0
    %42 = vperm.xlu0 %41, %v35
    %v43 = vpop.permute.xlu0 %42
    %vm44 = vcmp.eq.s32.totalorder %v37, %v40
    %vm45 = vcmp.eq.s32.totalorder %v37, %v43
    %v46 = vsel %vm44, 1, 0
    %v47 = vsel %vm45, 1, 0
    %v48 = vcvt.s32.f32 %v46
    %v49 = vcvt.s32.f32 %v47
    %v50 = vld [vmem:[#allocation2] sm:$0xff]
    %v51 = vld [vmem:[#allocation2 + $0x8] sm:$0xff]
    %v52 = vld [vmem:[#allocation2 + $0x10] sm:$0xff]
    %v53 = vld [vmem:[#allocation2 + $0x18] sm:$0xff]
    %v54 = vld [vmem:[#allocation2 + $0x20] sm:$0xff]
    %v55 = vld [vmem:[#allocation2 + $0x28] sm:$0xff]
    %v56 = vld [vmem:[#allocation2 + $0x30] sm:$0xff]
    %v57 = vld [vmem:[#allocation2 + $0x38] sm:$0xff]
    %v58 = vld [vmem:[#allocation2 + $0x40] sm:$0xff]
    %v59 = vld [vmem:[#allocation2 + $0x48] sm:$0xff]
    %v60 = vld [vmem:[#allocation2 + $0x50] sm:$0xff]
    %v61 = vld [vmem:[#allocation2 + $0x58] sm:$0xff]
    %v62 = vld [vmem:[#allocation2 + $0x60] sm:$0xff]
    %v63 = vld [vmem:[#allocation2 + $0x68] sm:$0xff]
    %v64 = vld [vmem:[#allocation2 + $0x70] sm:$0xff]
    %v65 = vld [vmem:[#allocation2 + $0x78] sm:$0xff]
    %66 = vmatprep.subr.mxu0 0.0
    %67 = vmatpush1.msra.mxu0 %v50
    %68 = vmatprep.subr.mxu0 0.0
    %69 = vmatpush1.msra.mxu0 %v51
    %70 = vmatprep.subr.mxu0 0.0
    %71 = vmatpush1.msra.mxu0 %v52
    %72 = vmatprep.subr.mxu0 0.0
    %73 = vmatpush1.msra.mxu0 %v53
    %74 = vmatprep.subr.mxu0 0.0
    %75 = vmatpush1.msra.mxu0 %v54
    %76 = vmatprep.subr.mxu0 0.0
    %77 = vmatpush1.msra.mxu0 %v55
    %78 = vmatprep.subr.mxu0 0.0
    %79 = vmatpush1.msra.mxu0 %v56
    %80 = vmatprep.subr.mxu0 0.0
    %81 = vmatpush1.msra.mxu0 %v57
    %82 = vmatprep.subr.mxu0 0.0
    %83 = vmatpush1.msra.mxu0 %v58
    %84 = vmatprep.subr.mxu0 0.0
    %85 = vmatpush1.msra.mxu0 %v59
    %86 = vmatprep.subr.mxu0 0.0
    %87 = vmatpush1.msra.mxu0 %v60
    %88 = vmatprep.subr.mxu0 0.0
    %89 = vmatpush1.msra.mxu0 %v61
    %90 = vmatprep.subr.mxu0 0.0
    %91 = vmatpush1.msra.mxu0 %v62
    %92 = vmatprep.subr.mxu0 0.0
    %93 = vmatpush1.msra.mxu0 %v63
    %94 = vmatprep.subr.mxu0 0.0
    %95 = vmatpush1.msra.mxu0 %v64
    %96 = vmatprep.subr.mxu0 0.0
    %97 = vmatpush1.msra.mxu0 %v65
    %98 = vmatprep.subr.mxu0 0.0
    %99 = vmatpush1.msra.mxu0 0.0
    %100 = vmatprep.subr.mxu0 0.0
    %101 = vmatpush1.msra.mxu0 0.0
    %102 = vmatprep.subr.mxu0 0.0
    %103 = vmatpush1.msra.mxu0 0.0
    %104 = vmatprep.subr.mxu0 0.0
    %105 = vmatpush1.msra.mxu0 0.0
    %106 = vmatprep.subr.mxu0 0.0
    %107 = vmatpush1.msra.mxu0 0.0
    %108 = vmatprep.subr.mxu0 0.0
    %109 = vmatpush1.msra.mxu0 0.0
    %110 = vmatprep.subr.mxu0 0.0
    %111 = vmatpush1.msra.mxu0 0.0
    %112 = vmatprep.subr.mxu0 0.0
    %113 = vmatpush1.msra.mxu0 0.0
    %114 = vmatprep.subr.mxu0 0.0
    %115 = vmatpush1.msra.mxu0 0.0
    %116 = vmatprep.subr.mxu0 0.0
    %117 = vmatpush1.msra.mxu0 0.0
    %118 = vmatprep.subr.mxu0 0.0
    %119 = vmatpush1.msra.mxu0 0.0
    %120 = vmatprep.subr.mxu0 0.0
    %121 = vmatpush1.msra.mxu0 0.0
    %122 = vmatprep.subr.mxu0 0.0
    %123 = vmatpush1.msra.mxu0 0.0
    %124 = vmatprep.subr.mxu0 0.0
    %125 = vmatpush1.msra.mxu0 0.0
    %126 = vmatprep.subr.mxu0 0.0
    %127 = vmatpush1.msra.mxu0 0.0
    %128 = vmatprep.subr.mxu0 0.0
    %129 = vmatpush1.msra.mxu0 0.0
    %130 = vmatprep.mubr.f32.mxu0 0.0
    %131 = vmatmul.mubr.f32.gmra.mrb[0].mxu0 %v48
    %v132 = vpop.f32.mrb[0].mxu0
    %v133 = vadd.f32 0.0, %v132
    %v134 = vpop.f32.mrb[0].mxu0
    %135 = vmatprep.mubr.f32.mxu0 0.0
    %136 = vmatmul.mubr.f32.gmra.mrb[0].mxu0 %v49
    %v137 = vpop.f32.mrb[0].mxu0
    %v138 = vadd.f32 0.0, %v137
    %v139 = vpop.f32.mrb[0].mxu0
    %140 = vdwg.mxu0
    %141 = vst [vmem:[#allocation5] sm:$0xff] %v133
    %142 = vst [vmem:[#allocation5 + $0x8] sm:$0xff] %v138
    // Predicated region
    $region14: #{tpu_custom_call.1} parent=1 // pred_check
      _
    $region15: #{tpu_custom_call.1} parent=1 // pred_check_branch
      %144 = sbr.rel (0) target = $region17
    $region16: #{tpu_custom_call.1} parent=1 // pred_region
      %s146 = ssub.s32 256, 256
      %147 = vsyncadd [#allocation4], %s146
      %s148 = sshll.u32 [#allocation5], 4
      %s149 = int_to_ptr.vmem [resolvable:$true] %s148
      %154 = dma.vmem_to_hbm [thread:$0]  %s149, 256, %s2, [#allocation4], 128, 128, 8
    $region17: #{tpu_custom_call.1} parent=1 // pred_fallthru
      _
    // Predicated region
    $region18: #{tpu_custom_call.1} parent=1 // pred_check
      _
    $region19: #{tpu_custom_call.1} parent=1 // pred_check_branch
      %156 = sbr.rel (0) target = $region21
    $region20: #{tpu_custom_call.1} parent=1 // pred_region
      %157 = dma.done [#allocation4], 256
    $region21: #{tpu_custom_call.1} parent=1 // pred_fallthru
      _
    %158 = vsyncpa [#allocation3], 1
    %159 = vsyncpa [#allocation4], 1

</llo_original>
